<compile_context>
chip_gen: v6e
topology: v6e:2x2x1
jax: 0.10.0
libtpu: 0.0.40
codegen_flags: <defaults>
</compile_context>

<pallas_src>
import functools

import jax
import jax.numpy as jnp
from jax.experimental import pallas as pl
from jax.experimental.pallas import tpu as pltpu

COUT_PAD = 8    # sublane-padded output-channel rows (6 -> 8)
LANE = 128      # M is padded to a multiple of this so stores are lane-dense


def _conv_matmul_kernel(w_ref, p_ref, b_ref, o_ref):
    """o = W @ P + b  — one MXU dot + one VPU broadcast add.

    w_ref: (COUT_PAD, K)      channel-major weights, zero-padded sublanes
    p_ref: (K, M_PAD)         im2col patches, lane axis = flattened (N, Ho, Wo)
    b_ref: (COUT_PAD, 1)      bias column (broadcast along lanes)
    o_ref: (COUT_PAD, M_PAD)  channel-major, lane-dense output
    """
    acc = jnp.dot(w_ref[...], p_ref[...], preferred_element_type=jnp.float32)
    o_ref[...] = (acc + b_ref[...]).astype(o_ref.dtype)


def prepare_conv_weights(w_oihw, bias):
    """Hoisted layout glue (call once): torch (Cout,Cin,KH,KW) -> kernel layout."""
    Cout, Cin, KH, KW = w_oihw.shape
    K = KH * KW * Cin
    # K-order (kh, kw, cin) to match the patch construction in conv2d_pallas.
    w2d = jnp.transpose(w_oihw, (0, 2, 3, 1)).reshape(Cout, K)      # (Cout, K)
    w_pad = jnp.pad(w2d, ((0, COUT_PAD - Cout), (0, 0)))            # (8, K)
    b_pad = jnp.pad(bias, (0, COUT_PAD - Cout)).reshape(COUT_PAD, 1)
    return w_pad, b_pad


@functools.partial(jax.jit, static_argnames=("cout", "kh", "kw"))
def conv2d_pallas(x_nchw, w_pad, b_pad, *, cout, kh, kw):
    """Conv2d(stride=1, padding=0) matching torch.nn.Conv2d semantics.

    x_nchw: (N, Cin, H, W) -> returns (N, cout, Ho, Wo), Ho=H-kh+1, Wo=W-kw+1.
    """
    N, Cin, H, W = x_nchw.shape
    Ho, Wo = H - kh + 1, W - kw + 1
    M = N * Ho * Wo
    K = kh * kw * Cin
    M_pad = ((M + LANE - 1) // LANE) * LANE

    # ---- im2col directly in (K, M) layout from NCHW ------------------------
    # Each tap is a contiguous (Ho, Wo) window; only leading axes move.
    taps = [
        jnp.transpose(x_nchw[:, :, i:i + Ho, j:j + Wo], (1, 0, 2, 3))  # (Cin,N,Ho,Wo)
        for i in range(kh)
        for j in range(kw)
    ]
    patches = jnp.stack(taps, axis=0).reshape(K, M)        # K-order (kh, kw, cin)
    patches = jnp.pad(patches, ((0, 0), (0, M_pad - M)))   # lane-pad M -> M_pad

    cost = pl.CostEstimate(
        flops=2 * COUT_PAD * M_pad * K,
        transcendentals=0,
        bytes_accessed=4 * (K * M_pad + COUT_PAD * K + COUT_PAD + COUT_PAD * M_pad),
    )

    # ---- single grid-less Pallas invocation (fully VMEM-resident) ----------
    out = pl.pallas_call(
        _conv_matmul_kernel,
        out_shape=jax.ShapeDtypeStruct((COUT_PAD, M_pad), x_nchw.dtype),
        in_specs=[
            pl.BlockSpec(memory_space=pltpu.MemorySpace.VMEM),
            pl.BlockSpec(memory_space=pltpu.MemorySpace.VMEM),
            pl.BlockSpec(memory_space=pltpu.MemorySpace.VMEM),
        ],
        out_specs=pl.BlockSpec(memory_space=pltpu.MemorySpace.VMEM),
        cost_estimate=cost,
    )(w_pad, patches, b_pad)

    # Channel-major result: restoring NCHW is a leading-axis transpose only.
    out = out[:cout, :M].reshape(cout, N, Ho, Wo)
    return jnp.transpose(out, (1, 0, 2, 3))                # (N, Cout, Ho, Wo)


if __name__ == "__main__":
    key = jax.random.PRNGKey(0)
    k_x, k_w, k_b = jax.random.split(key, 3)

    # Shapes implied by the module: Conv2d(3 -> 6, kernel_size=3).
    N, Cin, H, W = 2, 3, 16, 16
    Cout, KH, KW = 6, 3, 3

    x = jax.random.normal(k_x, (N, Cin, H, W), dtype=jnp.float32)
    weight = jax.random.normal(k_w, (Cout, Cin, KH, KW), dtype=jnp.float32) * 0.1
    bias = jax.random.normal(k_b, (Cout,), dtype=jnp.float32) * 0.1

    # Weight/bias layout prep hoisted out of the per-call path (done once).
    w_pad, b_pad = prepare_conv_weights(weight, bias)

    out = conv2d_pallas(x, w_pad, b_pad, cout=Cout, kh=KH, kw=KW)
    out = jax.block_until_ready(out)

    # Reference check against XLA's conv (same semantics as torch Conv2d).
    ref = jax.lax.conv_general_dilated(
        x, weight, window_strides=(1, 1), padding="VALID",
        dimension_numbers=("NCHW", "OIHW", "NCHW")) + bias[None, :, None, None]
    assert out.shape == (N, Cout, H - KH + 1, W - KW + 1)
    assert jnp.allclose(out, ref, atol=1e-4, rtol=1e-4)

    print("KERNEL_OK")
</pallas_src>

<mosaic_0001>
module attributes {stable_mosaic.version = 11 : i64} {
  func.func @_conv_matmul_kernel(%arg0: memref<8x27xf32, #tpu.memory_space<vmem>>, %arg1: memref<27x512xf32, #tpu.memory_space<vmem>>, %arg2: memref<8x1xf32, #tpu.memory_space<vmem>>, %arg3: memref<8x512xf32, #tpu.memory_space<vmem>>) attributes {dimension_semantics = [], scalar_prefetch = 0 : i64, scratch_operands = 0 : i64, tpu.core_type = #tpu.core_type<tc>} {
    %c0 = arith.constant 0 : index
    %c0_0 = arith.constant 0 : index
    %0 = vector.load %arg0[%c0, %c0_0] : memref<8x27xf32, #tpu.memory_space<vmem>>, vector<8x27xf32>
    %c0_1 = arith.constant 0 : index
    %c0_2 = arith.constant 0 : index
    %1 = vector.load %arg1[%c0_1, %c0_2] : memref<27x512xf32, #tpu.memory_space<vmem>>, vector<27x512xf32>
    %cst = arith.constant dense<0.000000e+00> : vector<8x512xf32>
    %2 = tpu.matmul %0, %1, %cst {dimension_numbers = #tpu.dot_dimension_numbers<[1], [0], [0], [1], [0, 0, 1, 1], [], []>} : vector<8x27xf32>, vector<27x512xf32>, vector<8x512xf32> -> vector<8x512xf32>
    %c0_3 = arith.constant 0 : index
    %c0_4 = arith.constant 0 : index
    %3 = vector.load %arg2[%c0_3, %c0_4] : memref<8x1xf32, #tpu.memory_space<vmem>>, vector<8x1xf32>
    %4 = vector.broadcast %3 : vector<8x1xf32> to vector<8x512xf32>
    %5 = arith.addf %2, %4 : vector<8x512xf32>
    %c0_5 = arith.constant 0 : index
    %c0_6 = arith.constant 0 : index
    %6 = vector.load %arg3[%c0_5, %c0_6] : memref<8x512xf32, #tpu.memory_space<vmem>>, vector<8x512xf32>
    tpu.vector_store %arg3[%c0_5, %c0_6], %5 {strides = array<i32>} : memref<8x512xf32, #tpu.memory_space<vmem>>, vector<8x512xf32>,
    return
  }
}

</mosaic_0001>

<llo_original>
// kernel: conv2d_pallas.1
$region0: #{conv2d_pallas.1}
  #allocation0 [shape = 'u32[]', space=smem, size = 0x4, offset = 0x4, fixed_abs, tag = 'smem constant byte address 0x4 - core index']
  #allocation1 [shape = 'u32[144,128]{1,0:T(1,128)}', space=vmem, size = 0x12000, scoped, tag = 'internal scratch']
  %s0 = inlined_call_operand.vmem [shape: f32[8,27], index: 0, kind: input, shape index: {}]
  %s1 = inlined_call_operand.vmem [shape: f32[27,512], index: 1, kind: input, shape index: {}]
  %s2 = inlined_call_operand.vmem [shape: f32[8,1], index: 2, kind: input, shape index: {}]
  %s3 = inlined_call_operand.vmem [shape: f32[8,512], index: 3, kind: output, shape index: {}]
  %s4 = sld [smem:[#allocation0]]
  $region22: #{conv2d_pallas.1} parent=0
    _
  %s6 = ssub.s32 1, %s4
  %s7 = scalar_select 0, %s6, %s4
  // Predicated region
  $region2: #{conv2d_pallas.1} parent=0 // pred_check
    _
  $region3: #{conv2d_pallas.1} parent=0 // pred_check_branch
    %9 = sbr.rel (0) target = $region5
  $region4: #{conv2d_pallas.1} parent=0 // pred_region
    _
  $region5: #{conv2d_pallas.1} parent=0 // pred_fallthru
    _
  // Predicated region
  $region6: #{conv2d_pallas.1} parent=0 // pred_check
    _
  $region7: #{conv2d_pallas.1} parent=0 // pred_check_branch
    %11 = sbr.rel (0) target = $region9
  $region8: #{conv2d_pallas.1} parent=0 // pred_region
    _
  $region9: #{conv2d_pallas.1} parent=0 // pred_fallthru
    _
  // Predicated region
  $region10: #{conv2d_pallas.1} parent=0 // pred_check
    _
  $region11: #{conv2d_pallas.1} parent=0 // pred_check_branch
    %13 = sbr.rel (0) target = $region13
  $region12: #{conv2d_pallas.1} parent=0 // pred_region
    _
  $region13: #{conv2d_pallas.1} parent=0 // pred_fallthru
    _
  %v14 = vld [vmem:[%s0] sm:$0xff]
  %v15 = vld [vmem:[%s1] sm:$0xff]
  %v16 = vld [vmem:[%s1 + $0x8] sm:$0xff]
  %v17 = vld [vmem:[%s1 + $0x10] sm:$0xff]
  %v18 = vld [vmem:[%s1 + $0x18] sm:$0xff]
  %v19 = vld [vmem:[%s1 + $0x20] sm:$0xff]
  %v20 = vld [vmem:[%s1 + $0x28] sm:$0xff]
  %v21 = vld [vmem:[%s1 + $0x30] sm:$0xff]
  %v22 = vld [vmem:[%s1 + $0x38] sm:$0xff]
  %v23 = vld [vmem:[%s1 + $0x40] sm:$0xff]
  %v24 = vld [vmem:[%s1 + $0x48] sm:$0xff]
  %v25 = vld [vmem:[%s1 + $0x50] sm:$0xff]
  %v26 = vld [vmem:[%s1 + $0x58] sm:$0xff]
  %v27 = vld [vmem:[%s1 + $0x60] sm:$0x7]
  %v28 = vld [vmem:[%s1 + $0x68] sm:$0x7]
  %v29 = vld [vmem:[%s1 + $0x70] sm:$0x7]
  %v30 = vld [vmem:[%s1 + $0x78] sm:$0x7]
  %v31 = vld [vmem:[%s2] sm:$0xff]
  %33 = vset.pattern.permute.xlu0 0
  %34 = vperm.xlu0 %33, %v31
  %v35 = vpop.permute.xlu0 %34
  %vm37 = vcmask 220160
  %v39 = vsel %vm37, %v14, 0
  %vm41 = vcmask 1042432
  %v43 = vsel %vm41, %v27, 0
  %v46 = vsel %vm41, %v28, 0
  %v49 = vsel %vm41, %v29, 0
  %v52 = vsel %vm41, %v30, 0
  %54 = vmatprep.subr.mxu0 0.0
  %55 = vmatpush1.msra.mxu0 0.0
  %56 = vmatprep.subr.mxu0 0.0
  %57 = vmatpush1.msra.mxu0 0.0
  %58 = vmatprep.subr.mxu0 0.0
  %59 = vmatpush1.msra.mxu0 0.0
  %60 = vmatprep.subr.mxu0 0.0
  %61 = vmatpush1.msra.mxu0 0.0
  %62 = vmatprep.subr.mxu0 0.0
  %63 = vmatpush1.msra.mxu0 0.0
  %64 = vmatprep.subr.mxu0 0.0
  %65 = vmatpush1.msra.mxu0 0.0
  %66 = vmatprep.subr.mxu0 0.0
  %67 = vmatpush1.msra.mxu0 0.0
  %68 = vmatprep.subr.mxu0 0.0
  %69 = vmatpush1.msra.mxu0 0.0
  %70 = vmatprep.subr.mxu0 0.0
  %71 = vmatpush1.msra.mxu0 0.0
  %72 = vmatprep.subr.mxu0 0.0
  %73 = vmatpush1.msra.mxu0 0.0
  %74 = vmatprep.subr.mxu0 0.0
  %75 = vmatpush1.msra.mxu0 0.0
  %76 = vmatprep.subr.mxu0 0.0
  %77 = vmatpush1.msra.mxu0 0.0
  %78 = vmatprep.subr.mxu0 %v46
  %79 = vmatpush1.msra.mxu0 %v43
  %80 = vmatprep.subr.mxu0 %v24
  %81 = vmatpush1.msra.mxu0 %v23
  %82 = vmatprep.subr.mxu0 %v20
  %83 = vmatpush1.msra.mxu0 %v19
  %84 = vmatprep.subr.mxu0 %v16
  %85 = vmatpush1.msra.mxu0 %v15
  %86 = vmatprep.subr.mxu0 0.0
  %87 = vmatpush2.msra.mxu0 0.0
  %88 = vmatprep.subr.mxu0 0.0
  %89 = vmatpush2.msra.mxu0 0.0
  %90 = vmatprep.subr.mxu0 0.0
  %91 = vmatpush2.msra.mxu0 0.0
  %92 = vmatprep.subr.mxu0 0.0
  %93 = vmatpush2.msra.mxu0 0.0
  %94 = vmatprep.subr.mxu0 0.0
  %95 = vmatpush2.msra.mxu0 0.0
  %96 = vmatprep.subr.mxu0 0.0
  %97 = vmatpush2.msra.mxu0 0.0
  %98 = vmatprep.subr.mxu0 0.0
  %99 = vmatpush2.msra.mxu0 0.0
  %100 = vmatprep.subr.mxu0 0.0
  %101 = vmatpush2.msra.mxu0 0.0
  %102 = vmatprep.subr.mxu0 0.0
  %103 = vmatpush2.msra.mxu0 0.0
  %104 = vmatprep.subr.mxu0 0.0
  %105 = vmatpush2.msra.mxu0 0.0
  %106 = vmatprep.subr.mxu0 0.0
  %107 = vmatpush2.msra.mxu0 0.0
  %108 = vmatprep.subr.mxu0 0.0
  %109 = vmatpush2.msra.mxu0 0.0
  %110 = vmatprep.subr.mxu0 0.0
  %111 = vmatpush2.msra.mxu0 0.0
  %112 = vmatprep.subr.mxu0 0.0
  %113 = vmatpush2.msra.mxu0 0.0
  %114 = vmatprep.subr.mxu0 0.0
  %115 = vmatpush2.msra.mxu0 0.0
  %116 = vmatprep.subr.mxu0 0.0
  %117 = vmatpush2.msra.mxu0 0.0
  %118 = vmatprep.mubr.f32.mxu0 0.0
  %119 = vmatmul.mubr.f32.gmra.mxu0 %v39
  %v120 = vpop.f32.mrf.mxu0
  %v121 = vadd.f32 %v35, %v120
  %v122 = vpop.f32.mrf.mxu0
  %v123 = vadd.f32 %v35, %v122
  %124 = vdwg.mxu0
  %125 = vmatprep.subr.mxu0 0.0
  %126 = vmatpush1.msra.mxu0 0.0
  %127 = vmatprep.subr.mxu0 0.0
  %128 = vmatpush1.msra.mxu0 0.0
  %129 = vmatprep.subr.mxu0 0.0
  %130 = vmatpush1.msra.mxu0 0.0
  %131 = vmatprep.subr.mxu0 0.0
  %132 = vmatpush1.msra.mxu0 0.0
  %133 = vmatprep.subr.mxu0 0.0
  %134 = vmatpush1.msra.mxu0 0.0
  %135 = vmatprep.subr.mxu0 0.0
  %136 = vmatpush1.msra.mxu0 0.0
  %137 = vmatprep.subr.mxu0 0.0
  %138 = vmatpush1.msra.mxu0 0.0
  %139 = vmatprep.subr.mxu0 0.0
  %140 = vmatpush1.msra.mxu0 0.0
  %141 = vmatprep.subr.mxu0 0.0
  %142 = vmatpush1.msra.mxu0 0.0
  %143 = vmatprep.subr.mxu0 0.0
  %144 = vmatpush1.msra.mxu0 0.0
  %145 = vmatprep.subr.mxu0 0.0
  %146 = vmatpush1.msra.mxu0 0.0
  %147 = vmatprep.subr.mxu0 0.0
  %148 = vmatpush1.msra.mxu0 0.0
  %149 = vmatprep.subr.mxu0 %v52
  %150 = vmatpush1.msra.mxu0 %v49
  %151 = vmatprep.subr.mxu0 %v26
  %152 = vmatpush1.msra.mxu0 %v25
  %153 = vmatprep.subr.mxu0 %v22
  %154 = vmatpush1.msra.mxu0 %v21
  %155 = vmatprep.subr.mxu0 %v18
  %156 = vmatpush1.msra.mxu0 %v17
  %157 = vmatprep.subr.mxu0 0.0
  %158 = vmatpush2.msra.mxu0 0.0
  %159 = vmatprep.subr.mxu0 0.0
  %160 = vmatpush2.msra.mxu0 0.0
  %161 = vmatprep.subr.mxu0 0.0
  %162 = vmatpush2.msra.mxu0 0.0
  %163 = vmatprep.subr.mxu0 0.0
  %164 = vmatpush2.msra.mxu0 0.0
  %165 = vmatprep.subr.mxu0 0.0
  %166 = vmatpush2.msra.mxu0 0.0
  %167 = vmatprep.subr.mxu0 0.0
  %168 = vmatpush2.msra.mxu0 0.0
  %169 = vmatprep.subr.mxu0 0.0
  %170 = vmatpush2.msra.mxu0 0.0
  %171 = vmatprep.subr.mxu0 0.0
  %172 = vmatpush2.msra.mxu0 0.0
  %173 = vmatprep.subr.mxu0 0.0
  %174 = vmatpush2.msra.mxu0 0.0
  %175 = vmatprep.subr.mxu0 0.0
  %176 = vmatpush2.msra.mxu0 0.0
  %177 = vmatprep.subr.mxu0 0.0
  %178 = vmatpush2.msra.mxu0 0.0
  %179 = vmatprep.subr.mxu0 0.0
  %180 = vmatpush2.msra.mxu0 0.0
  %181 = vmatprep.subr.mxu0 0.0
  %182 = vmatpush2.msra.mxu0 0.0
  %183 = vmatprep.subr.mxu0 0.0
  %184 = vmatpush2.msra.mxu0 0.0
  %185 = vmatprep.subr.mxu0 0.0
  %186 = vmatpush2.msra.mxu0 0.0
  %187 = vmatprep.subr.mxu0 0.0
  %188 = vmatpush2.msra.mxu0 0.0
  %189 = vmatprep.mubr.f32.mxu0 0.0
  %190 = vmatmul.mubr.f32.gmra.mxu0 %v39
  %v191 = vpop.f32.mrf.mxu0
  %v192 = vadd.f32 %v35, %v191
  %v193 = vpop.f32.mrf.mxu0
  %v194 = vadd.f32 %v35, %v193
  %195 = vdwg.mxu0
  %196 = vst [vmem:[%s3] sm:$0xff] %v121
  %197 = vst [vmem:[%s3 + $0x8] sm:$0xff] %v123
  %198 = vst [vmem:[%s3 + $0x10] sm:$0xff] %v192
  %199 = vst [vmem:[%s3 + $0x18] sm:$0xff] %v194
  // Predicated region
  $region14: #{conv2d_pallas.1} parent=0 // pred_check
    _
  $region15: #{conv2d_pallas.1} parent=0 // pred_check_branch
    %201 = sbr.rel (0) target = $region17
  $region16: #{conv2d_pallas.1} parent=0 // pred_region
    _
  $region17: #{conv2d_pallas.1} parent=0 // pred_fallthru
    _
  // Predicated region
  $region18: #{conv2d_pallas.1} parent=0 // pred_check
    _
  $region19: #{conv2d_pallas.1} parent=0 // pred_check_branch
    %203 = sbr.rel (0) target = $region21
  $region20: #{conv2d_pallas.1} parent=0 // pred_region
    _
  $region21: #{conv2d_pallas.1} parent=0 // pred_fallthru
    _

</llo_original>
